<compile_context>
chip_gen: v7x
topology: tpu7x:2x2x1
jax: 0.10.0
libtpu: 0.0.40
codegen_flags: <defaults>
</compile_context>

<pallas_src>
import functools

import jax
import jax.numpy as jnp
from jax.experimental import pallas as pl
from jax.experimental.pallas import tpu as pltpu

_SUBLANES = 8
_LANES = 128
# Double-buffered working-set budget for the x/out blocks.  Kept under v7x's
# 32 MiB scoped VMEM default (64 MiB physical); v5e/v6e have more headroom.
_VMEM_WORKING_SET_BYTES = 24 * 1024 * 1024


def _poly_regression_kernel(w_ref, b_ref, x_ref, o_ref, *, degree, input_dim):
    # w_ref : SMEM (degree*input_dim,) f32 — flattened PyTorch Linear weight;
    #         w_ref[i*input_dim + d] multiplies x[:, d] ** (i + 1).
    # b_ref : SMEM (1,) f32
    # x_ref : VMEM (input_dim, 8, tn)     — batch on (sublane, lane), fully dense.
    # o_ref : VMEM (8, tn) f32            — sublane+lane dense output slab.
    acc = None
    for d in range(input_dim):
        xd = x_ref[d].astype(jnp.float32)            # (8, tn), full vreg occupancy
        # Horner: sum_i w[i,d]*xd**(i+1) = xd*(w[0,d] + xd*(w[1,d] + ...)).
        # Start from the scalar weight; the first t * xd does the broadcast.
        t = w_ref[(degree - 1) * input_dim + d]
        for i in range(degree - 2, -1, -1):
            t = t * xd + w_ref[i * input_dim + d]
        term = t * xd
        acc = term if acc is None else acc + term
    o_ref[...] = acc + b_ref[0]                      # bias as trailing scalar add


def _round_up(x, m):
    return ((x + m - 1) // m) * m


def polynomial_regression_forward(x, weight, bias, degree, *, store_x_bf16=False):
    """x: (N, D) f32; weight: (1, D*degree) f32 (PyTorch layout); bias: (1,) f32."""
    assert degree >= 1, "degree must be >= 1 (PyTorch cat of empty list errors)"
    n, d = x.shape

    # Single relayout pass over x: feature-major transpose, batch folded onto
    # (sublane=8, lane=cols).  The reshape is free after the transpose copy and
    # the (at most 7-row) pad-to-8 fuses with it under XLA.
    n8 = _round_up(n, _SUBLANES)
    x_t = x.astype(jnp.float32).T                    # (D, N)
    if n8 != n:
        x_t = jnp.pad(x_t, ((0, 0), (0, n8 - n)))    # padded samples -> bias, sliced off
    cols = n8 // _SUBLANES
    x_arr = x_t.reshape(d, _SUBLANES, cols)
    if store_x_bf16:
        # Storage-only dtype: halves HBM traffic; Horner math stays f32 in-kernel.
        x_arr = x_arr.astype(jnp.bfloat16)

    w_flat = weight.reshape(-1).astype(jnp.float32)  # (degree*D,)
    b_flat = bias.reshape(-1).astype(jnp.float32)    # (1,)

    # Lane-axis tile: as large as the VMEM budget allows (amortizes the ~0.35us
    # per-grid-step overhead), but always >= 2 blocks when cols > 128 so v7x's
    # two TensorCores both get work on the "parallel" axis.
    bytes_per_col = 2 * _SUBLANES * (d * x_arr.dtype.itemsize + 4)  # dbl-buffered x + out
    tn_budget = max(_LANES,
                    (_VMEM_WORKING_SET_BYTES // bytes_per_col) // _LANES * _LANES)
    if cols <= _LANES:
        tn = cols                                    # single full block (tiny N)
    else:
        half = _LANES * pl.cdiv(pl.cdiv(cols, 2), _LANES)
        tn = min(tn_budget, half)
    grid = (pl.cdiv(cols, tn),)                      # ragged edge block: stores are masked

    kernel = functools.partial(_poly_regression_kernel, degree=degree, input_dim=d)

    out = pl.pallas_call(
        kernel,
        out_shape=jax.ShapeDtypeStruct((_SUBLANES, cols), jnp.float32),
        grid=grid,
        in_specs=[
            pl.BlockSpec(memory_space=pltpu.MemorySpace.SMEM),        # weights
            pl.BlockSpec(memory_space=pltpu.MemorySpace.SMEM),        # bias
            pl.BlockSpec((d, _SUBLANES, tn), lambda i: (0, 0, i)),    # x (sublane+lane dense)
        ],
        out_specs=pl.BlockSpec((_SUBLANES, tn), lambda i: (0, i)),
        compiler_params=pltpu.CompilerParams(
            dimension_semantics=("parallel",),       # megacore sharding on v7x
            vmem_limit_bytes=32 * 1024 * 1024,       # raise v5e's 16 MiB scoped default
        ),
    )(w_flat, b_flat, x_arr)

    # (8, cols) -> flat sample order -> (N, 1); padded samples sliced off.
    return out.reshape(-1)[:n].reshape(n, 1)


def _reference(x, weight, bias, degree):
    poly = jnp.concatenate([x ** (i + 1) for i in range(degree)], axis=1)
    return poly @ weight.T + bias


if __name__ == "__main__":
    key = jax.random.PRNGKey(0)
    k_x, k_w, k_b, k_x2 = jax.random.split(key, 4)

    batch = 8
    input_dim = 4
    degree = 3

    x = jax.random.normal(k_x, (batch, input_dim), dtype=jnp.float32)
    # Deterministic Linear(in=input_dim*degree, out=1) params (PyTorch layout).
    weight = jax.random.normal(k_w, (1, input_dim * degree), dtype=jnp.float32) * 0.1
    bias = jax.random.normal(k_b, (1,), dtype=jnp.float32) * 0.1

    out = polynomial_regression_forward(x, weight, bias, degree)
    out = jax.block_until_ready(out)
    ref = _reference(x, weight, bias, degree)
    assert out.shape == (batch, 1)
    assert jnp.allclose(out, ref, atol=1e-5, rtol=1e-5)

    # Secondary check: exercises pad-to-8, multi-block grid and the ragged
    # edge block (still a tiny problem in absolute terms).
    x2 = jax.random.normal(k_x2, (1234, input_dim), dtype=jnp.float32)
    out2 = jax.block_until_ready(
        polynomial_regression_forward(x2, weight, bias, degree))
    ref2 = _reference(x2, weight, bias, degree)
    assert out2.shape == (1234, 1)
    assert jnp.allclose(out2, ref2, atol=1e-5, rtol=1e-5)

    print("KERNEL_OK")
</pallas_src>

<mosaic_0001>
module attributes {stable_mosaic.version = 11 : i64} {
  func.func @_poly_regression_kernel(%arg0: i32, %arg1: memref<12xf32, #tpu.memory_space<smem>>, %arg2: memref<1xf32, #tpu.memory_space<smem>>, %arg3: memref<4x8x1xf32, #tpu.memory_space<vmem>>, %arg4: memref<8x1xf32, #tpu.memory_space<vmem>>) attributes {dimension_semantics = [#tpu.dimension_semantics<parallel>], iteration_bounds = array<i64: 1>, scalar_prefetch = 0 : i64, scratch_operands = 0 : i64, tpu.core_type = #tpu.core_type<tc>, window_params = [{transform_indices = @transform_0, window_bounds = array<i64: 12>}, {transform_indices = @transform_1, window_bounds = array<i64: 1>}, {transform_indices = @transform_2, window_bounds = array<i64: 4, 8, 1>}, {transform_indices = @transform_3, window_bounds = array<i64: 8, 1>}]} {
    %c0 = arith.constant 0 : index
    %c0_0 = arith.constant 0 : index
    %c0_1 = arith.constant 0 : index
    %0 = vector.load %arg3[%c0, %c0_0, %c0_1] : memref<4x8x1xf32, #tpu.memory_space<vmem>>, vector<1x8x1xf32>
    %1 = vector.shape_cast %0 : vector<1x8x1xf32> to vector<8x1xf32>
    %c8 = arith.constant 8 : index
    %2 = memref.load %arg1[%c8] : memref<12xf32, #tpu.memory_space<smem>>
    %3 = vector.broadcast %2 : f32 to vector<8x1xf32>
    %4 = arith.mulf %3, %1 : vector<8x1xf32>
    %c4 = arith.constant 4 : index
    %5 = memref.load %arg1[%c4] : memref<12xf32, #tpu.memory_space<smem>>
    %6 = vector.broadcast %5 : f32 to vector<8x1xf32>
    %7 = arith.addf %4, %6 : vector<8x1xf32>
    %8 = arith.mulf %7, %1 : vector<8x1xf32>
    %c0_2 = arith.constant 0 : index
    %9 = memref.load %arg1[%c0_2] : memref<12xf32, #tpu.memory_space<smem>>
    %10 = vector.broadcast %9 : f32 to vector<8x1xf32>
    %11 = arith.addf %8, %10 : vector<8x1xf32>
    %12 = arith.mulf %11, %1 : vector<8x1xf32>
    %c1 = arith.constant 1 : index
    %c0_3 = arith.constant 0 : index
    %c0_4 = arith.constant 0 : index
    %13 = vector.load %arg3[%c1, %c0_3, %c0_4] : memref<4x8x1xf32, #tpu.memory_space<vmem>>, vector<1x8x1xf32>
    %14 = vector.shape_cast %13 : vector<1x8x1xf32> to vector<8x1xf32>
    %c9 = arith.constant 9 : index
    %15 = memref.load %arg1[%c9] : memref<12xf32, #tpu.memory_space<smem>>
    %16 = vector.broadcast %15 : f32 to vector<8x1xf32>
    %17 = arith.mulf %16, %14 : vector<8x1xf32>
    %c5 = arith.constant 5 : index
    %18 = memref.load %arg1[%c5] : memref<12xf32, #tpu.memory_space<smem>>
    %19 = vector.broadcast %18 : f32 to vector<8x1xf32>
    %20 = arith.addf %17, %19 : vector<8x1xf32>
    %21 = arith.mulf %20, %14 : vector<8x1xf32>
    %c1_5 = arith.constant 1 : index
    %22 = memref.load %arg1[%c1_5] : memref<12xf32, #tpu.memory_space<smem>>
    %23 = vector.broadcast %22 : f32 to vector<8x1xf32>
    %24 = arith.addf %21, %23 : vector<8x1xf32>
    %25 = arith.mulf %24, %14 : vector<8x1xf32>
    %26 = arith.addf %12, %25 : vector<8x1xf32>
    %c2 = arith.constant 2 : index
    %c0_6 = arith.constant 0 : index
    %c0_7 = arith.constant 0 : index
    %27 = vector.load %arg3[%c2, %c0_6, %c0_7] : memref<4x8x1xf32, #tpu.memory_space<vmem>>, vector<1x8x1xf32>
    %28 = vector.shape_cast %27 : vector<1x8x1xf32> to vector<8x1xf32>
    %c10 = arith.constant 10 : index
    %29 = memref.load %arg1[%c10] : memref<12xf32, #tpu.memory_space<smem>>
    %30 = vector.broadcast %29 : f32 to vector<8x1xf32>
    %31 = arith.mulf %30, %28 : vector<8x1xf32>
    %c6 = arith.constant 6 : index
    %32 = memref.load %arg1[%c6] : memref<12xf32, #tpu.memory_space<smem>>
    %33 = vector.broadcast %32 : f32 to vector<8x1xf32>
    %34 = arith.addf %31, %33 : vector<8x1xf32>
    %35 = arith.mulf %34, %28 : vector<8x1xf32>
    %c2_8 = arith.constant 2 : index
    %36 = memref.load %arg1[%c2_8] : memref<12xf32, #tpu.memory_space<smem>>
    %37 = vector.broadcast %36 : f32 to vector<8x1xf32>
    %38 = arith.addf %35, %37 : vector<8x1xf32>
    %39 = arith.mulf %38, %28 : vector<8x1xf32>
    %40 = arith.addf %26, %39 : vector<8x1xf32>
    %c3 = arith.constant 3 : index
    %c0_9 = arith.constant 0 : index
    %c0_10 = arith.constant 0 : index
    %41 = vector.load %arg3[%c3, %c0_9, %c0_10] : memref<4x8x1xf32, #tpu.memory_space<vmem>>, vector<1x8x1xf32>
    %42 = vector.shape_cast %41 : vector<1x8x1xf32> to vector<8x1xf32>
    %c11 = arith.constant 11 : index
    %43 = memref.load %arg1[%c11] : memref<12xf32, #tpu.memory_space<smem>>
    %44 = vector.broadcast %43 : f32 to vector<8x1xf32>
    %45 = arith.mulf %44, %42 : vector<8x1xf32>
    %c7 = arith.constant 7 : index
    %46 = memref.load %arg1[%c7] : memref<12xf32, #tpu.memory_space<smem>>
    %47 = vector.broadcast %46 : f32 to vector<8x1xf32>
    %48 = arith.addf %45, %47 : vector<8x1xf32>
    %49 = arith.mulf %48, %42 : vector<8x1xf32>
    %c3_11 = arith.constant 3 : index
    %50 = memref.load %arg1[%c3_11] : memref<12xf32, #tpu.memory_space<smem>>
    %51 = vector.broadcast %50 : f32 to vector<8x1xf32>
    %52 = arith.addf %49, %51 : vector<8x1xf32>
    %53 = arith.mulf %52, %42 : vector<8x1xf32>
    %54 = arith.addf %40, %53 : vector<8x1xf32>
    %c0_12 = arith.constant 0 : index
    %55 = memref.load %arg2[%c0_12] : memref<1xf32, #tpu.memory_space<smem>>
    %56 = vector.broadcast %55 : f32 to vector<8x1xf32>
    %57 = arith.addf %54, %56 : vector<8x1xf32>
    %c0_13 = arith.constant 0 : index
    %c0_14 = arith.constant 0 : index
    %58 = vector.load %arg4[%c0_13, %c0_14] : memref<8x1xf32, #tpu.memory_space<vmem>>, vector<8x1xf32>
    tpu.vector_store %arg4[%c0_13, %c0_14], %57 {strides = array<i32>} : memref<8x1xf32, #tpu.memory_space<vmem>>, vector<8x1xf32>,
    return
  }
  func.func @transform_0(%arg0: i32) -> i32 {
    %c0_i32 = arith.constant 0 : i32
    %c0_i32_0 = arith.constant 0 : i32
    return %c0_i32 : i32
  }
  func.func @transform_1(%arg0: i32) -> i32 {
    %c0_i32 = arith.constant 0 : i32
    %c0_i32_0 = arith.constant 0 : i32
    return %c0_i32 : i32
  }
  func.func @transform_2(%arg0: i32) -> (i32, i32, i32) {
    %c0_i32 = arith.constant 0 : i32
    %c0_i32_0 = arith.constant 0 : i32
    %c0_i32_1 = arith.constant 0 : i32
    return %c0_i32, %c0_i32_0, %arg0 : i32, i32, i32
  }
  func.func @transform_3(%arg0: i32) -> (i32, i32) {
    %c0_i32 = arith.constant 0 : i32
    %c0_i32_0 = arith.constant 0 : i32
    return %c0_i32, %arg0 : i32, i32
  }
}

</mosaic_0001>

<llo_original>
// kernel: tpu_custom_call.1
$region0: #{tpu_custom_call.1}
  #allocation0 [shape = 'u32[]', space=smem, size = 0x4, offset = 0x4, fixed_abs, tag = 'smem constant byte address 0x4 - core index']
  #allocation1 [shape = 'u32[144,128]{1,0:T(1,128)}', space=vmem, size = 0x12000, scoped, tag = 'internal scratch']
  #allocation2 [shape = 'f32[1]{0:T(128)S(6)}', space=smem, size = 0x200, scoped, tag = 'scoped memory for tpu_custom_call.1']
  %s0 = inlined_call_operand.vmem [shape: f32[12], index: 0, kind: input, shape index: {}]
  %s1 = inlined_call_operand.<no memory space> [shape: f32[1], index: 1, kind: input, shape index: {}]
  %s2 = inlined_call_operand.vmem [shape: f32[4,8,1], index: 2, kind: input, shape index: {}]
  %s3 = inlined_call_operand.vmem [shape: f32[8,1], index: 3, kind: output, shape index: {}]
  %s4 = sld [smem:[#allocation0]]
  $region26: #{tpu_custom_call.1} parent=0
    _
  %s6 = ssub.s32 1, %s4
  %s7 = scalar_select 0, %s6, %s4
  %8 = sst [smem:[#allocation2]] %s1
  $region1: #{tpu_custom_call.1} parent=0
    #allocation3 [shape = 'u8[512]{0}', space=smem, size = 0x200, scoped, tag = 'input window, operand 0, single buffered']
    #allocation4 [shape = 's32[1]{0}', space=sflag, size = 0x4, scoped, tag = 'scoped memory for tpu_custom_call.1']
    %9 = vsyncpa [#allocation4], 0
    // Predicated region
    $region2: #{tpu_custom_call.1} parent=1 // pred_check
      _
    $region3: #{tpu_custom_call.1} parent=1 // pred_check_branch
      %11 = sbr.rel (0) target = $region5
    $region4: #{tpu_custom_call.1} parent=1 // pred_region
      %s13 = ssub.s32 16, 16
      %14 = vsyncadd [#allocation4], %s13
      %s16 = sshll.u32 %s0, 4
      %s17 = int_to_ptr.vmem [resolvable:$true] %s16
      %19 = dma.vmem_to_smem %s17, 16, [#allocation3], [#allocation4]
    $region5: #{tpu_custom_call.1} parent=1 // pred_fallthru
      _
    // Predicated region
    $region6: #{tpu_custom_call.1} parent=1 // pred_check
      _
    $region7: #{tpu_custom_call.1} parent=1 // pred_check_branch
      %21 = sbr.rel (0) target = $region9
    $region8: #{tpu_custom_call.1} parent=1 // pred_region
      _
    $region9: #{tpu_custom_call.1} parent=1 // pred_fallthru
      _
    // Predicated region
    $region10: #{tpu_custom_call.1} parent=1 // pred_check
      _
    $region11: #{tpu_custom_call.1} parent=1 // pred_check_branch
      %23 = sbr.rel (0) target = $region13
    $region12: #{tpu_custom_call.1} parent=1 // pred_region
      _
    $region13: #{tpu_custom_call.1} parent=1 // pred_fallthru
      _
    // Predicated region
    $region14: #{tpu_custom_call.1} parent=1 // pred_check
      _
    $region15: #{tpu_custom_call.1} parent=1 // pred_check_branch
      %25 = sbr.rel (0) target = $region17
    $region16: #{tpu_custom_call.1} parent=1 // pred_region
      %26 = dma.done [#allocation4], 16
    $region17: #{tpu_custom_call.1} parent=1 // pred_fallthru
      _
    %27 = sfence
    %v28 = vld [vmem:[%s2] sm:$0xff]
    %s29 = sld [smem:[#allocation3 + $0x8]]
    %v30 = vstv %s29
    %v31 = vmul.f32 %v30, %v28
    %s32 = sld [smem:[#allocation3 + $0x4]]
    %v33 = vstv %s32
    %v34 = vadd.f32 %v31, %v33
    %v35 = vmul.f32 %v34, %v28
    %s36 = sld [smem:[#allocation3]]
    %v37 = vstv %s36
    %v38 = vadd.f32 %v35, %v37
    %v39 = vmul.f32 %v38, %v28
    %s40 = scalar_lea.vmem %s2, 8
    %v41 = vld [vmem:[%s40] sm:$0xff]
    %s42 = sld [smem:[#allocation3 + $0x9]]
    %v43 = vstv %s42
    %v44 = vmul.f32 %v43, %v41
    %s45 = sld [smem:[#allocation3 + $0x5]]
    %v46 = vstv %s45
    %v47 = vadd.f32 %v44, %v46
    %v48 = vmul.f32 %v47, %v41
    %s49 = sld [smem:[#allocation3 + $0x1]]
    %v50 = vstv %s49
    %v51 = vadd.f32 %v48, %v50
    %v52 = vmul.f32 %v51, %v41
    %v53 = vadd.f32 %v39, %v52
    %s54 = scalar_lea.vmem %s2, 16
    %v55 = vld [vmem:[%s54] sm:$0xff]
    %s56 = sld [smem:[#allocation3 + $0xa]]
    %v57 = vstv %s56
    %v58 = vmul.f32 %v57, %v55
    %s59 = sld [smem:[#allocation3 + $0x6]]
    %v60 = vstv %s59
    %v61 = vadd.f32 %v58, %v60
    %v62 = vmul.f32 %v61, %v55
    %s63 = sld [smem:[#allocation3 + $0x2]]
    %v64 = vstv %s63
    %v65 = vadd.f32 %v62, %v64
    %v66 = vmul.f32 %v65, %v55
    %v67 = vadd.f32 %v53, %v66
    %s68 = scalar_lea.vmem %s2, 24
    %v69 = vld [vmem:[%s68] sm:$0xff]
    %s70 = sld [smem:[#allocation3 + $0xb]]
    %v71 = vstv %s70
    %v72 = vmul.f32 %v71, %v69
    %s73 = sld [smem:[#allocation3 + $0x7]]
    %v74 = vstv %s73
    %v75 = vadd.f32 %v72, %v74
    %v76 = vmul.f32 %v75, %v69
    %s77 = sld [smem:[#allocation3 + $0x3]]
    %v78 = vstv %s77
    %v79 = vadd.f32 %v76, %v78
    %v80 = vmul.f32 %v79, %v69
    %v81 = vadd.f32 %v67, %v80
    %s82 = sld [smem:[#allocation2]]
    %v83 = vstv %s82
    %v84 = vadd.f32 %v81, %v83
    %vm85 = vcmask 7168
    %86 = vst.msk [vmem:[%s3] sm:$0xff] %vm85, %v84
    // Predicated region
    $region18: #{tpu_custom_call.1} parent=1 // pred_check
      _
    $region19: #{tpu_custom_call.1} parent=1 // pred_check_branch
      %88 = sbr.rel (0) target = $region21
    $region20: #{tpu_custom_call.1} parent=1 // pred_region
      _
    $region21: #{tpu_custom_call.1} parent=1 // pred_fallthru
      _
    // Predicated region
    $region22: #{tpu_custom_call.1} parent=1 // pred_check
      _
    $region23: #{tpu_custom_call.1} parent=1 // pred_check_branch
      %90 = sbr.rel (0) target = $region25
    $region24: #{tpu_custom_call.1} parent=1 // pred_region
      _
    $region25: #{tpu_custom_call.1} parent=1 // pred_fallthru
      _
    %91 = vsyncpa [#allocation4], 1

</llo_original>
